<compile_context>
chip_gen: v7x
topology: tpu7x:2x2x1
jax: 0.10.0
libtpu: 0.0.40
codegen_flags: <defaults>
</compile_context>

<pallas_src>
import functools

import jax
import jax.numpy as jnp
from jax import lax
from jax.experimental import pallas as pl
from jax.experimental.pallas import tpu as pltpu


# ---------------------------------------------------------------------------
# Kernel
# ---------------------------------------------------------------------------
def _linear_gelu_like_kernel(x_ref, w_ref, b_ref, o_ref):
    # x_ref: (TM, K) f32   w_ref: (K, N) bf16 (pre-transposed at init)
    # b_ref: (1, N) f32    o_ref: (TM, N) f32
    x_bf = x_ref[...].astype(jnp.bfloat16)
    v1 = lax.dot_general(
        x_bf,
        w_ref[...],
        dimension_numbers=(((1,), (0,)), ((), ())),   # canonical (TM,K)x(K,N)
        preferred_element_type=jnp.float32,           # f32 accumulation on MXU
    )
    v1 = v1 + b_ref[...]                 # (TM, N) + (1, N) broadcast, f32
    v2 = jnp.tanh(v1)                    # EUP
    v3 = v2 * 0.5
    v4 = lax.erf(v3)                     # VPU polynomial; filler under DMA/MXU
    v5 = v4 + 1.0
    o_ref[...] = (v2 * v5).astype(o_ref.dtype)


# ---------------------------------------------------------------------------
# Wrapper
# ---------------------------------------------------------------------------
def prepare_params(w, b):
    """One-time parameter prep (analogue of module __init__).

    w: (N, K) f32 PyTorch Linear layout -> returns (K, N) bf16.
    b: (N,)  f32                        -> returns (1, N) f32.
    """
    w_t = jnp.asarray(w).T.astype(jnp.bfloat16)      # (K, N), done once
    b2 = jnp.asarray(b).reshape(1, -1).astype(jnp.float32)
    return w_t, b2


def _round_up(v, m):
    return ((v + m - 1) // m) * m


def _pick_tm(M, tm_max):
    if M <= 1024:
        # Tiny batch: single grid step; tm == full M is a legal block shape.
        return M
    # Medium/large M: guarantee >= 2 grid steps (v7x has 2 TCs) and keep the
    # tile a multiple of 256 (=> sublane aligned) while capped by tm_max.
    tm = min(tm_max, _round_up(pl.cdiv(M, 2), 256))
    return max(256, min(tm, M))


def _const_block_spec(shape):
    """Constant-index (resident) block; single-buffered when supported."""
    try:
        return pl.BlockSpec(shape, lambda i: (0, 0),
                            pipeline_mode=pl.Buffered(1))
    except TypeError:  # older JAX without pipeline_mode kwarg
        return pl.BlockSpec(shape, lambda i: (0, 0))


@functools.partial(jax.jit, static_argnames=("tm_max",))
def model_forward(x, w_t, b2, *, tm_max=4096):
    """x: (M, 256) f32; w_t: (256, 128) bf16; b2: (1, 128) f32."""
    M, K = x.shape
    N = w_t.shape[1]

    tm = _pick_tm(M, tm_max)
    grid_m = pl.cdiv(M, tm)

    return pl.pallas_call(
        _linear_gelu_like_kernel,
        out_shape=jax.ShapeDtypeStruct((M, N), jnp.float32),
        grid_spec=pltpu.PrefetchScalarGridSpec(
            num_scalar_prefetch=0,
            grid=(grid_m,),
            in_specs=[
                pl.BlockSpec((tm, K), lambda i: (i, 0)),   # x: tiled over M
                _const_block_spec((K, N)),                 # w: VMEM-resident
                _const_block_spec((1, N)),                 # b: VMEM-resident
            ],
            out_specs=pl.BlockSpec((tm, N), lambda i: (i, 0)),
        ),
        compiler_params=pltpu.CompilerParams(
            dimension_semantics=("parallel",),
            vmem_limit_bytes=48 * 1024 * 1024,
        ),
    )(x, w_t, b2)


# ---------------------------------------------------------------------------
# Reference (pure JAX, f32 end-to-end)
# ---------------------------------------------------------------------------
def _reference(x, w, b):
    v1 = x @ w.T + b
    v2 = jnp.tanh(v1)
    v3 = v2 * 0.5
    v4 = lax.erf(v3)
    v5 = v4 + 1.0
    return v2 * v5


if __name__ == "__main__":
    key = jax.random.PRNGKey(0)
    kx, kw, kb = jax.random.split(key, 3)

    IN_FEATURES, OUT_FEATURES = 256, 128
    BATCH = 8

    # PyTorch Linear default init: U(-1/sqrt(in), 1/sqrt(in))
    bound = 1.0 / (IN_FEATURES ** 0.5)
    w = jax.random.uniform(kw, (OUT_FEATURES, IN_FEATURES), jnp.float32, -bound, bound)
    b = jax.random.uniform(kb, (OUT_FEATURES,), jnp.float32, -bound, bound)
    x = jax.random.normal(kx, (BATCH, IN_FEATURES), jnp.float32)

    # One-time parameter prep (transpose + bf16 cast at "init", not per call).
    w_t, b2 = prepare_params(w, b)

    out = model_forward(x, w_t, b2)
    out = jax.block_until_ready(out)

    ref = _reference(x, w, b)
    assert out.shape == (BATCH, OUT_FEATURES)
    # bf16 matmul operands (f32 accumulation) -> loosened tolerance.
    assert jnp.allclose(out, ref, atol=2e-2, rtol=2e-2), float(
        jnp.max(jnp.abs(out - ref)))

    print("KERNEL_OK")
</pallas_src>

<mosaic_0001>
module attributes {stable_mosaic.version = 11 : i64} {
  func.func @_linear_gelu_like_kernel(%arg0: i32, %arg1: memref<8x256xf32, #tpu.memory_space<vmem>>, %arg2: memref<256x128xbf16, #tpu.memory_space<vmem>>, %arg3: memref<1x128xf32, #tpu.memory_space<vmem>>, %arg4: memref<8x128xf32, #tpu.memory_space<vmem>>) attributes {dimension_semantics = [#tpu.dimension_semantics<parallel>], iteration_bounds = array<i64: 1>, scalar_prefetch = 0 : i64, scratch_operands = 0 : i64, tpu.core_type = #tpu.core_type<tc>, window_params = [{transform_indices = @transform_0, window_bounds = array<i64: 8, 256>}, {pipeline_mode = #tpu.pipeline_mode<synchronous>, transform_indices = @transform_1, window_bounds = array<i64: 256, 128>}, {pipeline_mode = #tpu.pipeline_mode<synchronous>, transform_indices = @transform_2, window_bounds = array<i64: 1, 128>}, {transform_indices = @transform_3, window_bounds = array<i64: 8, 128>}]} {
    %c0 = arith.constant 0 : index
    %c0_0 = arith.constant 0 : index
    %0 = vector.load %arg1[%c0, %c0_0] : memref<8x256xf32, #tpu.memory_space<vmem>>, vector<8x256xf32>
    %1 = arith.truncf %0 : vector<8x256xf32> to vector<8x256xbf16>
    %c0_1 = arith.constant 0 : index
    %c0_2 = arith.constant 0 : index
    %2 = vector.load %arg2[%c0_1, %c0_2] : memref<256x128xbf16, #tpu.memory_space<vmem>>, vector<256x128xbf16>
    %cst = arith.constant dense<0.000000e+00> : vector<8x128xf32>
    %3 = tpu.matmul %1, %2, %cst {dimension_numbers = #tpu.dot_dimension_numbers<[1], [0], [0], [1], [0, 0, 1, 1], [], []>} : vector<8x256xbf16>, vector<256x128xbf16>, vector<8x128xf32> -> vector<8x128xf32>
    %c0_3 = arith.constant 0 : index
    %c0_4 = arith.constant 0 : index
    %4 = vector.load %arg3[%c0_3, %c0_4] : memref<1x128xf32, #tpu.memory_space<vmem>>, vector<1x128xf32>
    %5 = vector.broadcast %4 : vector<1x128xf32> to vector<8x128xf32>
    %6 = arith.addf %3, %5 : vector<8x128xf32>
    %7 = math.tanh %6 : vector<8x128xf32>
    %cst_5 = arith.constant 5.000000e-01 : f32
    %8 = vector.broadcast %cst_5 : f32 to vector<8x128xf32>
    %9 = arith.mulf %7, %8 : vector<8x128xf32>
    %10 = math.erf %9 : vector<8x128xf32>
    %cst_6 = arith.constant 1.000000e+00 : f32
    %11 = vector.broadcast %cst_6 : f32 to vector<8x128xf32>
    %12 = arith.addf %10, %11 : vector<8x128xf32>
    %13 = arith.mulf %7, %12 : vector<8x128xf32>
    %c0_7 = arith.constant 0 : index
    %c0_8 = arith.constant 0 : index
    %14 = vector.load %arg4[%c0_7, %c0_8] : memref<8x128xf32, #tpu.memory_space<vmem>>, vector<8x128xf32>
    tpu.vector_store %arg4[%c0_7, %c0_8], %13 {strides = array<i32>} : memref<8x128xf32, #tpu.memory_space<vmem>>, vector<8x128xf32>,
    return
  }
  func.func @transform_0(%arg0: i32) -> (i32, i32) {
    %c0_i32 = arith.constant 0 : i32
    %c0_i32_0 = arith.constant 0 : i32
    return %arg0, %c0_i32 : i32, i32
  }
  func.func @transform_1(%arg0: i32) -> (i32, i32) {
    %c0_i32 = arith.constant 0 : i32
    %c0_i32_0 = arith.constant 0 : i32
    %c0_i32_1 = arith.constant 0 : i32
    return %c0_i32, %c0_i32_0 : i32, i32
  }
  func.func @transform_2(%arg0: i32) -> (i32, i32) {
    %c0_i32 = arith.constant 0 : i32
    %c0_i32_0 = arith.constant 0 : i32
    %c0_i32_1 = arith.constant 0 : i32
    return %c0_i32, %c0_i32_0 : i32, i32
  }
  func.func @transform_3(%arg0: i32) -> (i32, i32) {
    %c0_i32 = arith.constant 0 : i32
    %c0_i32_0 = arith.constant 0 : i32
    return %arg0, %c0_i32 : i32, i32
  }
}

</mosaic_0001>

<llo_original>
// kernel: model_forward.1
$region0: #{model_forward.1}
  #allocation0 [shape = 'u32[]', space=smem, size = 0x4, offset = 0x4, fixed_abs, tag = 'smem constant byte address 0x4 - core index']
  #allocation1 [shape = 'u32[144,128]{1,0:T(1,128)}', space=vmem, size = 0x12000, scoped, tag = 'internal scratch']
  %s0 = inlined_call_operand.hbm [shape: f32[8,256], index: 0, kind: input, shape index: {}]
  %s1 = inlined_call_operand.hbm [shape: bf16[256,128], index: 1, kind: input, shape index: {}]
  %s2 = inlined_call_operand.vmem [shape: f32[1,128], index: 2, kind: input, shape index: {}]
  %s3 = inlined_call_operand.hbm [shape: f32[8,128], index: 3, kind: output, shape index: {}]
  %s4 = sld [smem:[#allocation0]]
  $region30: #{model_forward.1} parent=0
    _
  %s6 = ssub.s32 1, %s4
  %s7 = scalar_select 0, %s6, %s4
  $region1: #{model_forward.1} parent=0
    #allocation2 [shape = 'u8[8192]{0}', space=vmem, size = 0x2000, scoped, tag = 'input window, operand 0, single buffered']
    #allocation3 [shape = 's32[1]{0}', space=sflag, size = 0x4, scoped, tag = 'scoped memory for model_forward.1']
    #allocation4 [shape = 's32[1]{0}', space=sflag, size = 0x4, scoped, tag = 'scoped memory for model_forward.1']
    #allocation5 [shape = 'u8[65536]{0}', space=vmem, size = 0x10000, scoped, tag = 'input window, operand 1, single buffered']
    #allocation6 [shape = 's32[1]{0}', space=sflag, size = 0x4, scoped, tag = 'scoped memory for model_forward.1']
    #allocation7 [shape = 'u8[4096]{0}', space=vmem, size = 0x1000, scoped, tag = 'output window, operand 0, single buffered']
    %8 = vsyncpa [#allocation3], 0
    %9 = vsyncpa [#allocation6], 0
    %10 = vsyncpa [#allocation4], 0
    // Predicated region
    $region2: #{model_forward.1} parent=1 // pred_check
      _
    $region3: #{model_forward.1} parent=1 // pred_check_branch
      %12 = sbr.rel (0) target = $region5
    $region4: #{model_forward.1} parent=1 // pred_region
      %s14 = ssub.s32 256, 256
      %15 = vsyncadd [#allocation3], %s14
      %s17 = sshll.u32 [#allocation2], 4
      %s18 = int_to_ptr.vmem [resolvable:$true] %s17
      %20 = dma.hbm_to_vmem [thread:$0]  %s0, 256, %s18, [#allocation3]
    $region5: #{model_forward.1} parent=1 // pred_fallthru
      _
    // Predicated region
    $region6: #{model_forward.1} parent=1 // pred_check
      _
    $region7: #{model_forward.1} parent=1 // pred_check_branch
      %22 = sbr.rel (0) target = $region9
    $region8: #{model_forward.1} parent=1 // pred_region
      %s24 = ssub.s32 2048, 2048
      %25 = vsyncadd [#allocation6], %s24
      %s26 = sshll.u32 [#allocation5], 4
      %s27 = int_to_ptr.vmem [resolvable:$true] %s26
      %32 = dma.hbm_to_vmem [thread:$0]  %s1, 2048, %s27, [#allocation6], 64, 64, 4
    $region9: #{model_forward.1} parent=1 // pred_fallthru
      _
    // Predicated region
    $region10: #{model_forward.1} parent=1 // pred_check
      _
    $region11: #{model_forward.1} parent=1 // pred_check_branch
      %34 = sbr.rel (0) target = $region13
    $region12: #{model_forward.1} parent=1 // pred_region
      _
    $region13: #{model_forward.1} parent=1 // pred_fallthru
      _
    // Predicated region
    $region14: #{model_forward.1} parent=1 // pred_check
      _
    $region15: #{model_forward.1} parent=1 // pred_check_branch
      %36 = sbr.rel (0) target = $region17
    $region16: #{model_forward.1} parent=1 // pred_region
      %37 = dma.done [#allocation3], 256
    $region17: #{model_forward.1} parent=1 // pred_fallthru
      _
    // Predicated region
    $region18: #{model_forward.1} parent=1 // pred_check
      _
    $region19: #{model_forward.1} parent=1 // pred_check_branch
      %39 = sbr.rel (0) target = $region21
    $region20: #{model_forward.1} parent=1 // pred_region
      %40 = dma.done [#allocation6], 2048
    $region21: #{model_forward.1} parent=1 // pred_fallthru
      _
    %v42 = vld [vmem:[#allocation2] sm:$0xff]
    %v43 = vld [vmem:[#allocation2 + $0x8] sm:$0xff]
    %v44 = vpack.c.bf16 %v42, %v42
    %v45 = vpack.c.bf16 %v43, %v43
    %v46 = vld [vmem:[#allocation5] sm:$0xf]
    %v47 = vld [vmem:[#allocation5 + $0x4] sm:$0xf]
    %v48 = vld [vmem:[#allocation5 + $0x8] sm:$0xf]
    %v49 = vld [vmem:[#allocation5 + $0xc] sm:$0xf]
    %v50 = vld [vmem:[#allocation5 + $0x10] sm:$0xf]
    %v51 = vld [vmem:[#allocation5 + $0x14] sm:$0xf]
    %v52 = vld [vmem:[#allocation5 + $0x18] sm:$0xf]
    %v53 = vld [vmem:[#allocation5 + $0x1c] sm:$0xf]
    %v54 = vld [vmem:[#allocation5 + $0x20] sm:$0xf]
    %v55 = vld [vmem:[#allocation5 + $0x24] sm:$0xf]
    %v56 = vld [vmem:[#allocation5 + $0x28] sm:$0xf]
    %v57 = vld [vmem:[#allocation5 + $0x2c] sm:$0xf]
    %v58 = vld [vmem:[#allocation5 + $0x30] sm:$0xf]
    %v59 = vld [vmem:[#allocation5 + $0x34] sm:$0xf]
    %v60 = vld [vmem:[#allocation5 + $0x38] sm:$0xf]
    %v61 = vld [vmem:[#allocation5 + $0x3c] sm:$0xf]
    %v62 = vld [vmem:[#allocation5 + $0x40] sm:$0xf]
    %v63 = vld [vmem:[#allocation5 + $0x44] sm:$0xf]
    %v64 = vld [vmem:[#allocation5 + $0x48] sm:$0xf]
    %v65 = vld [vmem:[#allocation5 + $0x4c] sm:$0xf]
    %v66 = vld [vmem:[#allocation5 + $0x50] sm:$0xf]
    %v67 = vld [vmem:[#allocation5 + $0x54] sm:$0xf]
    %v68 = vld [vmem:[#allocation5 + $0x58] sm:$0xf]
    %v69 = vld [vmem:[#allocation5 + $0x5c] sm:$0xf]
    %v70 = vld [vmem:[#allocation5 + $0x60] sm:$0xf]
    %v71 = vld [vmem:[#allocation5 + $0x64] sm:$0xf]
    %v72 = vld [vmem:[#allocation5 + $0x68] sm:$0xf]
    %v73 = vld [vmem:[#allocation5 + $0x6c] sm:$0xf]
    %v74 = vld [vmem:[#allocation5 + $0x70] sm:$0xf]
    %v75 = vld [vmem:[#allocation5 + $0x74] sm:$0xf]
    %v76 = vld [vmem:[#allocation5 + $0x78] sm:$0xf]
    %v77 = vld [vmem:[#allocation5 + $0x7c] sm:$0xf]
    %v78 = vld [vmem:[%s2] sm:$0x1]
    %v80 = vlaneseq
    %v81 = vshrl.u32 %v80, 7
    %v82 = vsub.s32 0, %v81
    %v83 = vrot.slane %v78, %v82
    %v117 = vunpack.c.l.b16 %v46
    %v118 = vunpack.c.l.b16 %v47
    %v119 = vunpack.c.l.b16 %v48
    %v120 = vunpack.c.l.b16 %v49
    %v121 = vunpack.c.l.b16 %v50
    %v122 = vunpack.c.l.b16 %v51
    %v123 = vunpack.c.l.b16 %v52
    %v124 = vunpack.c.l.b16 %v53
    %v125 = vunpack.c.l.b16 %v54
    %v126 = vunpack.c.l.b16 %v55
    %v127 = vunpack.c.l.b16 %v56
    %v128 = vunpack.c.l.b16 %v57
    %v129 = vunpack.c.l.b16 %v58
    %v130 = vunpack.c.l.b16 %v59
    %v131 = vunpack.c.l.b16 %v60
    %v132 = vunpack.c.l.b16 %v61
    %v133 = vunpack.c.l.b16 %v62
    %v134 = vunpack.c.l.b16 %v63
    %v135 = vunpack.c.l.b16 %v64
    %v136 = vunpack.c.l.b16 %v65
    %v137 = vunpack.c.l.b16 %v66
    %v138 = vunpack.c.l.b16 %v67
    %v139 = vunpack.c.l.b16 %v68
    %v140 = vunpack.c.l.b16 %v69
    %v141 = vunpack.c.l.b16 %v70
    %v142 = vunpack.c.l.b16 %v71
    %v143 = vunpack.c.l.b16 %v72
    %v144 = vunpack.c.l.b16 %v73
    %v145 = vunpack.c.l.b16 %v74
    %v146 = vunpack.c.l.b16 %v75
    %v147 = vunpack.c.l.b16 %v76
    %v148 = vunpack.c.l.b16 %v77
    %v149 = vpack.c.b16 %v118, %v117
    %v150 = vpack.c.b16 %v120, %v119
    %v151 = vpack.c.b16 %v122, %v121
    %v152 = vpack.c.b16 %v124, %v123
    %v153 = vpack.c.b16 %v126, %v125
    %v154 = vpack.c.b16 %v128, %v127
    %v155 = vpack.c.b16 %v130, %v129
    %v156 = vpack.c.b16 %v132, %v131
    %v157 = vpack.c.b16 %v134, %v133
    %v158 = vpack.c.b16 %v136, %v135
    %v159 = vpack.c.b16 %v138, %v137
    %v160 = vpack.c.b16 %v140, %v139
    %v161 = vpack.c.b16 %v142, %v141
    %v162 = vpack.c.b16 %v144, %v143
    %v163 = vpack.c.b16 %v146, %v145
    %v164 = vpack.c.b16 %v148, %v147
    %181 = vmatprep.subr.bf16.mxu0 0
    %182 = vmatpush1.bf16.msra.mxu0 %v149
    %183 = vmatprep.subr.bf16.mxu0 0
    %184 = vmatpush1.bf16.msra.mxu0 %v150
    %185 = vmatprep.subr.bf16.mxu0 0
    %186 = vmatpush1.bf16.msra.mxu0 %v151
    %187 = vmatprep.subr.bf16.mxu0 0
    %188 = vmatpush1.bf16.msra.mxu0 %v152
    %189 = vmatprep.subr.bf16.mxu0 0
    %190 = vmatpush1.bf16.msra.mxu0 %v153
    %191 = vmatprep.subr.bf16.mxu0 0
    %192 = vmatpush1.bf16.msra.mxu0 %v154
    %193 = vmatprep.subr.bf16.mxu0 0
    %194 = vmatpush1.bf16.msra.mxu0 %v155
    %195 = vmatprep.subr.bf16.mxu0 0
    %196 = vmatpush1.bf16.msra.mxu0 %v156
    %197 = vmatprep.subr.bf16.mxu0 0
    %198 = vmatpush1.bf16.msra.mxu0 %v157
    %199 = vmatprep.subr.bf16.mxu0 0
    %200 = vmatpush1.bf16.msra.mxu0 %v158
    %201 = vmatprep.subr.bf16.mxu0 0
    %202 = vmatpush1.bf16.msra.mxu0 %v159
    %203 = vmatprep.subr.bf16.mxu0 0
    %204 = vmatpush1.bf16.msra.mxu0 %v160
    %205 = vmatprep.subr.bf16.mxu0 0
    %206 = vmatpush1.bf16.msra.mxu0 %v161
    %207 = vmatprep.subr.bf16.mxu0 0
    %208 = vmatpush1.bf16.msra.mxu0 %v162
    %209 = vmatprep.subr.bf16.mxu0 0
    %210 = vmatpush1.bf16.msra.mxu0 %v163
    %211 = vmatprep.subr.bf16.mxu0 0
    %212 = vmatpush1.bf16.msra.mxu0 %v164
    %213 = vmatprep.mubr.bf16.mxu0 %v45
    %214 = vmatmul.mubr.bf16.gmra.mrb[0].mxu0 %v44
    %v215 = vpop.f32.mrb[0].mxu0
    %v216 = vadd.f32 %v83, %v215
    %v217 = vpop.f32.mrb[0].mxu0
    %v218 = vpop.f32.mrb[0].mxu0
    %v219 = vpop.f32.mrb[0].mxu0
    %220 = vdwg.mxu0
    %v221 = vtanh.pop %v216
    %v222 = vmul.f32 %v221, 0.5
    %v223 = verf.f32.pop %v222
    %v224 = vadd.f32 %v223, 1.0
    %v225 = vmul.f32 %v221, %v224
    %226 = vst [vmem:[#allocation7] sm:$0xff] %v225
    // Predicated region
    $region22: #{model_forward.1} parent=1 // pred_check
      _
    $region23: #{model_forward.1} parent=1 // pred_check_branch
      %228 = sbr.rel (0) target = $region25
    $region24: #{model_forward.1} parent=1 // pred_region
      %s230 = ssub.s32 128, 128
      %231 = vsyncadd [#allocation4], %s230
      %s233 = sshll.u32 [#allocation7], 4
      %s234 = int_to_ptr.vmem [resolvable:$true] %s233
      %236 = dma.vmem_to_hbm [thread:$0]  %s234, 128, %s3, [#allocation4]
    $region25: #{model_forward.1} parent=1 // pred_fallthru
      _
    // Predicated region
    $region26: #{model_forward.1} parent=1 // pred_check
      _
    $region27: #{model_forward.1} parent=1 // pred_check_branch
      %238 = sbr.rel (0) target = $region29
    $region28: #{model_forward.1} parent=1 // pred_region
      %239 = dma.done [#allocation4], 128
    $region29: #{model_forward.1} parent=1 // pred_fallthru
      _
    %240 = vsyncpa [#allocation3], 1
    %241 = vsyncpa [#allocation6], 1
    %242 = vsyncpa [#allocation4], 1

</llo_original>
